<compile_context>
chip_gen: v6e
topology: v6e:2x2x1
jax: 0.10.0
libtpu: 0.0.40
codegen_flags: <defaults>
</compile_context>

<pallas_src>
import functools

import jax
import jax.numpy as jnp
from jax.experimental import pallas as pl
from jax.experimental.pallas import tpu as pltpu

LANE = 128


def _round_up(x, m):
    return ((x + m - 1) // m) * m


def _hardswish(x):
    # MobileNetV3 activation, computed in f32 on the VPU.
    return x * jnp.clip(x + 3.0, 0.0, 6.0) * (1.0 / 6.0)


# ----------------------------------------------------------------------------
# Fused kernel: backbone at k==0, streaming edge-attr partial sums every step,
# adjacency finalize + dense GNN head + classifier at the last step.
# ----------------------------------------------------------------------------
def _fused_kernel(img_ref, patches_ref, w_emb_ref, b_emb_ref,
                  w_cls_ref, b_cls_ref, w_gnn_ref, b_gnn_ref,
                  w_out_ref, b_out_ref, out_ref, adj_acc, h_scratch,
                  *, batch, n_patches, e_pad, inv_f):
    k = pl.program_id(0)
    nk = pl.num_programs(0)

    # ---- k == 0: zero the adjacency accumulator and run the whole backbone.
    # The backbone is independent of the edge_attr reduction, so issuing its MXU
    # work on the first step lets it overlap the DMA + VPU streaming of the
    # remaining image chunks instead of running in a serial tail.
    @pl.when(k == 0)
    def _():
        adj_acc[...] = jnp.zeros_like(adj_acc)

        # feature extractor (MobileNetV3 stand-in):
        # patch-conv embed (one tall [B*P, Dp] matmul) -> hardswish
        # -> global average pool -> classifier Linear -> hardswish (-> dropout=id)
        z = jnp.dot(patches_ref[...], w_emb_ref[...],
                    preferred_element_type=jnp.float32) + b_emb_ref[...]   # [B*P, D1]
        z = _hardswish(z)
        feats = jnp.mean(z.reshape(batch, n_patches, z.shape[-1]), axis=1)  # [B, D1]
        hcls = jnp.dot(feats.astype(jnp.bfloat16), w_cls_ref[...],
                       preferred_element_type=jnp.float32) + b_cls_ref[...]  # [B, D2]
        h_scratch[...] = _hardswish(hcls)

    # ---- every step: streaming pairwise |x_j - x_i| partial sums.
    # The chunk is [B, S, 128] with S a multiple of 8, so the VPU abs-diff runs
    # on fully packed vregs.  Only a sublane-axis partial reduce happens per
    # chunk; the single cross-lane reduce is deferred to the last step.
    x = img_ref[...]                                     # [B, S, 128] f32
    for i in range(batch):                               # tiny static loop
        d = jnp.abs(x - x[i:i + 1])                      # [B, S, 128]
        adj_acc[i] = adj_acc[i] + jnp.sum(d, axis=1)     # [B, 128]

    # ---- k == last: finalize adjacency, dense GNN message pass, classifier.
    @pl.when(k == nk - 1)
    def _():
        # adj[i, j] = mean(|images[j] - images[i]|)  (== get_edge_attr)
        adj = jnp.sum(adj_acc[...], axis=-1) * inv_f                        # [B, B]
        hfeat = h_scratch[...]                                              # [B, D2]
        # single fused [D2, 2E] weight: columns [0:E) = W_self, [E:2E) = W_nb
        both = jnp.dot(hfeat.astype(jnp.bfloat16), w_gnn_ref[...],
                       preferred_element_type=jnp.float32)                  # [B, 2E]
        # bf16 operands -> single MXU pass (f32 accumulation).
        msg = jnp.dot(adj.astype(jnp.bfloat16),
                      both[:, e_pad:].astype(jnp.bfloat16),
                      preferred_element_type=jnp.float32)                   # [B, E]
        g = jnp.maximum(both[:, :e_pad] + msg + b_gnn_ref[...], 0.0)        # [B, E]
        out_ref[...] = jnp.dot(g.astype(jnp.bfloat16), w_out_ref[...],
                               preferred_element_type=jnp.float32) + b_out_ref[...]


# ----------------------------------------------------------------------------
# Glue: patch extraction, parameter init (pre-padded to lane multiples), forward
# ----------------------------------------------------------------------------
def extract_patches(images, patch):
    # images: [B, C, H, W] -> [B, P, C*patch*patch]
    b, c, h, w = images.shape
    hp, wp = h // patch, w // patch
    x = images.reshape(b, c, hp, patch, wp, patch)
    x = jnp.transpose(x, (0, 2, 4, 1, 3, 5))            # [B, hp, wp, C, p, p]
    return x.reshape(b, hp * wp, c * patch * patch)


def init_params(key, patch_dim, backbone_dim, feature_size, embedding_size,
                num_classes):
    """Small-dim weights, zero-padded to lane multiples; matmul weights bf16."""
    ks = jax.random.split(key, 5)
    s = 0.05
    dp_pad = _round_up(patch_dim, LANE)
    d1_pad = _round_up(backbone_dim, LANE)
    d2_pad = _round_up(feature_size, LANE)
    e_pad = _round_up(embedding_size, LANE)
    nc_pad = _round_up(num_classes, LANE)

    def w(k, rows, cols, rows_pad, cols_pad):
        m = s * jax.random.normal(k, (rows, cols), jnp.float32)
        return jnp.pad(m, ((0, rows_pad - rows), (0, cols_pad - cols)))

    w_self = w(ks[2], feature_size, embedding_size, d2_pad, e_pad)
    w_nb = w(ks[3], feature_size, embedding_size, d2_pad, e_pad)
    return {
        "w_emb": w(ks[0], patch_dim, backbone_dim, dp_pad, d1_pad).astype(jnp.bfloat16),
        "b_emb": jnp.zeros((1, d1_pad), jnp.float32),
        "w_cls": w(ks[1], backbone_dim, feature_size, d1_pad, d2_pad).astype(jnp.bfloat16),
        "b_cls": jnp.zeros((1, d2_pad), jnp.float32),
        "w_gnn": jnp.concatenate([w_self, w_nb], axis=1).astype(jnp.bfloat16),
        "b_gnn": jnp.zeros((1, e_pad), jnp.float32),
        "w_out": w(ks[4], embedding_size, num_classes, e_pad, nc_pad).astype(jnp.bfloat16),
        "b_out": jnp.zeros((1, nc_pad), jnp.float32),
    }


@functools.partial(jax.jit, static_argnames=("patch", "num_classes"))
def mobilenet_gnn_forward(params, images, patch=4, num_classes=5):
    b, c, h, w = images.shape
    f_total = c * h * w
    p = (h // patch) * (w // patch)
    dp = c * patch * patch
    dp_pad = _round_up(dp, LANE)

    # --- patch layout for the backbone matmul: [B*P, Dp] zero-padded, bf16.
    patches = extract_patches(images, patch).reshape(b * p, dp)
    patches = jnp.pad(patches, ((0, 0), (0, dp_pad - dp))).astype(jnp.bfloat16)

    # --- flattened images for edge_attr, presented as [B, S, 128] so the
    # streaming abs-diff runs on fully packed vregs.  Chunk size is derived from
    # a ~16 MiB double-buffered VMEM budget (single chunk for small images).
    f_unit = LANE * 8                                   # keeps S a multiple of 8
    f_total_pad = _round_up(f_total, f_unit)
    budget_elems = (16 * 1024 * 1024) // (2 * 4 * b)    # 2 buffers * 4 B/elem
    f_chunk = min(f_total_pad, max(f_unit, (budget_elems // f_unit) * f_unit))
    n_chunks = -(-f_total_pad // f_chunk)
    padded_total = n_chunks * f_chunk
    images_3d = jnp.pad(images.reshape(b, f_total),
                        ((0, 0), (0, padded_total - f_total))
                        ).reshape(b, padded_total // LANE, LANE)

    # edge_index of the torch model (dense graph); consumed implicitly as the
    # dense [B, B] adjacency inside the kernel.

    d1_pad = params["w_emb"].shape[1]
    d2_pad = params["w_cls"].shape[1]
    e_pad = params["w_gnn"].shape[1] // 2
    nc_pad = params["w_out"].shape[1]

    kernel = functools.partial(_fused_kernel, batch=b, n_patches=p,
                               e_pad=e_pad, inv_f=1.0 / float(f_total))

    full = lambda k: (0, 0)
    logits_pad = pl.pallas_call(
        kernel,
        out_shape=jax.ShapeDtypeStruct((b, nc_pad), jnp.float32),
        grid_spec=pltpu.PrefetchScalarGridSpec(
            num_scalar_prefetch=0,
            grid=(n_chunks,),
            in_specs=[
                # image chunks, [B, S_chunk, 128]
                pl.BlockSpec((b, f_chunk // LANE, LANE), lambda k: (0, k, 0)),
                pl.BlockSpec((b * p, dp_pad), full),            # patches
                pl.BlockSpec((dp_pad, d1_pad), full),           # w_emb
                pl.BlockSpec((1, d1_pad), full),                # b_emb
                pl.BlockSpec((d1_pad, d2_pad), full),           # w_cls
                pl.BlockSpec((1, d2_pad), full),                # b_cls
                pl.BlockSpec((d2_pad, 2 * e_pad), full),        # w_gnn = [Ws|Wn]
                pl.BlockSpec((1, e_pad), full),                 # b_gnn
                pl.BlockSpec((e_pad, nc_pad), full),            # w_out
                pl.BlockSpec((1, nc_pad), full),                # b_out
            ],
            out_specs=pl.BlockSpec((b, nc_pad), full),
            scratch_shapes=[
                pltpu.VMEM((b, b, LANE), jnp.float32),   # adjacency partial sums
                pltpu.VMEM((b, d2_pad), jnp.float32),    # backbone features h
            ],
        ),
        compiler_params=pltpu.CompilerParams(
            # Single reduction axis over feature chunks; output stays resident.
            dimension_semantics=("arbitrary",),
            # ~16 MiB image double-buffer + sub-MiB weights: fits with headroom
            # on all generations (v7x physical VMEM is 64 MiB).
            vmem_limit_bytes=32 * 1024 * 1024,
        ),
    )(images_3d, patches, params["w_emb"], params["b_emb"],
      params["w_cls"], params["b_cls"], params["w_gnn"], params["b_gnn"],
      params["w_out"], params["b_out"])

    return logits_pad[:, :num_classes]


if __name__ == "__main__":
    key = jax.random.PRNGKey(0)
    k_img, k_par = jax.random.split(key)

    B, C, H, W = 2, 3, 32, 32
    patch = 4
    patch_dim = C * patch * patch          # 48
    backbone_dim = 32                      # stand-in for mobilenet feature channels
    feature_size = 32                      # stand-in for classifier[3].in_features
    embedding_size = 32
    num_classes = 5

    images = jax.random.normal(k_img, (B, C, H, W), jnp.float32)
    params = init_params(k_par, patch_dim, backbone_dim, feature_size,
                         embedding_size, num_classes)

    out = mobilenet_gnn_forward(params, images, patch=patch, num_classes=num_classes)
    out = jax.block_until_ready(out)
    assert out.shape == (B, num_classes)
    print("KERNEL_OK")
</pallas_src>

<mosaic_0001>
module attributes {stable_mosaic.version = 11 : i64} {
  func.func @_fused_kernel(%arg0: i32, %arg1: memref<2x24x128xf32, #tpu.memory_space<vmem>>, %arg2: memref<128x128xbf16, #tpu.memory_space<vmem>>, %arg3: memref<128x128xbf16, #tpu.memory_space<vmem>>, %arg4: memref<1x128xf32, #tpu.memory_space<vmem>>, %arg5: memref<128x128xbf16, #tpu.memory_space<vmem>>, %arg6: memref<1x128xf32, #tpu.memory_space<vmem>>, %arg7: memref<128x256xbf16, #tpu.memory_space<vmem>>, %arg8: memref<1x128xf32, #tpu.memory_space<vmem>>, %arg9: memref<128x128xbf16, #tpu.memory_space<vmem>>, %arg10: memref<1x128xf32, #tpu.memory_space<vmem>>, %arg11: memref<2x128xf32, #tpu.memory_space<vmem>>, %arg12: memref<2x2x128xf32, #tpu.memory_space<vmem>>, %arg13: memref<2x128xf32, #tpu.memory_space<vmem>>) attributes {dimension_semantics = [#tpu.dimension_semantics<arbitrary>], iteration_bounds = array<i64: 1>, scalar_prefetch = 0 : i64, scratch_operands = 2 : i64, tpu.core_type = #tpu.core_type<tc>, window_params = [{transform_indices = @transform_0, window_bounds = array<i64: 2, 24, 128>}, {pipeline_mode = #tpu.pipeline_mode<synchronous>, transform_indices = @transform_1, window_bounds = array<i64: 128, 128>}, {pipeline_mode = #tpu.pipeline_mode<synchronous>, transform_indices = @transform_2, window_bounds = array<i64: 128, 128>}, {pipeline_mode = #tpu.pipeline_mode<synchronous>, transform_indices = @transform_3, window_bounds = array<i64: 1, 128>}, {pipeline_mode = #tpu.pipeline_mode<synchronous>, transform_indices = @transform_4, window_bounds = array<i64: 128, 128>}, {pipeline_mode = #tpu.pipeline_mode<synchronous>, transform_indices = @transform_5, window_bounds = array<i64: 1, 128>}, {pipeline_mode = #tpu.pipeline_mode<synchronous>, transform_indices = @transform_6, window_bounds = array<i64: 128, 256>}, {pipeline_mode = #tpu.pipeline_mode<synchronous>, transform_indices = @transform_7, window_bounds = array<i64: 1, 128>}, {pipeline_mode = #tpu.pipeline_mode<synchronous>, transform_indices = @transform_8, window_bounds = array<i64: 128, 128>}, {pipeline_mode = #tpu.pipeline_mode<synchronous>, transform_indices = @transform_9, window_bounds = array<i64: 1, 128>}, {pipeline_mode = #tpu.pipeline_mode<synchronous>, transform_indices = @transform_10, window_bounds = array<i64: 2, 128>}]} {
    %c0_i32 = arith.constant 0 : i32
    %0 = arith.cmpi eq, %arg0, %c0_i32 : i32
    %1 = arith.extui %0 : i1 to i32
    %c0_i32_0 = arith.constant 0 : i32
    %2 = arith.cmpi ne, %1, %c0_i32_0 : i32
    scf.if %2 {
      %cst_17 = arith.constant 0.000000e+00 : f32
      %29 = vector.broadcast %cst_17 : f32 to vector<2x2x128xf32>
      %c0_18 = arith.constant 0 : index
      %c0_19 = arith.constant 0 : index
      %c0_20 = arith.constant 0 : index
      %30 = vector.load %arg12[%c0_18, %c0_19, %c0_20] : memref<2x2x128xf32, #tpu.memory_space<vmem>>, vector<2x2x128xf32>
      tpu.vector_store %arg12[%c0_18, %c0_19, %c0_20], %29 {strides = array<i32>} : memref<2x2x128xf32, #tpu.memory_space<vmem>>, vector<2x2x128xf32>,
      %c0_21 = arith.constant 0 : index
      %c0_22 = arith.constant 0 : index
      %31 = vector.load %arg2[%c0_21, %c0_22] : memref<128x128xbf16, #tpu.memory_space<vmem>>, vector<128x128xbf16>
      %c0_23 = arith.constant 0 : index
      %c0_24 = arith.constant 0 : index
      %32 = vector.load %arg3[%c0_23, %c0_24] : memref<128x128xbf16, #tpu.memory_space<vmem>>, vector<128x128xbf16>
      %cst_25 = arith.constant dense<0.000000e+00> : vector<128x128xf32>
      %33 = tpu.matmul %31, %32, %cst_25 {dimension_numbers = #tpu.dot_dimension_numbers<[1], [0], [0], [1], [0, 0, 1, 1], [], []>} : vector<128x128xbf16>, vector<128x128xbf16>, vector<128x128xf32> -> vector<128x128xf32>
      %c0_26 = arith.constant 0 : index
      %c0_27 = arith.constant 0 : index
      %34 = vector.load %arg4[%c0_26, %c0_27] : memref<1x128xf32, #tpu.memory_space<vmem>>, vector<1x128xf32>
      %35 = vector.broadcast %34 : vector<1x128xf32> to vector<128x128xf32>
      %36 = arith.addf %33, %35 : vector<128x128xf32>
      %cst_28 = arith.constant 3.000000e+00 : f32
      %37 = vector.broadcast %cst_28 : f32 to vector<128x128xf32>
      %38 = arith.addf %36, %37 : vector<128x128xf32>
      %cst_29 = arith.constant 0.000000e+00 : f32
      %cst_30 = arith.constant 6.000000e+00 : f32
      %39 = vector.broadcast %cst_29 : f32 to vector<128x128xf32>
      %40 = arith.maximumf %39, %38 : vector<128x128xf32>
      %41 = vector.broadcast %cst_30 : f32 to vector<128x128xf32>
      %42 = arith.minimumf %41, %40 : vector<128x128xf32>
      %43 = arith.mulf %36, %42 : vector<128x128xf32>
      %cst_31 = arith.constant 0.166666672 : f32
      %44 = vector.broadcast %cst_31 : f32 to vector<128x128xf32>
      %45 = arith.mulf %43, %44 : vector<128x128xf32>
      %46 = vector.shape_cast %45 : vector<128x128xf32> to vector<2x64x128xf32>
      %cst_32 = arith.constant dense<0.000000e+00> : vector<2x128xf32>
      %47 = vector.multi_reduction <add>, %46, %cst_32 [1] : vector<2x64x128xf32> to vector<2x128xf32>
      %cst_33 = arith.constant 6.400000e+01 : f32
      %48 = vector.broadcast %cst_33 : f32 to vector<2x128xf32>
      %49 = arith.divf %47, %48 : vector<2x128xf32>
      %50 = arith.truncf %49 : vector<2x128xf32> to vector<2x128xbf16>
      %c0_34 = arith.constant 0 : index
      %c0_35 = arith.constant 0 : index
      %51 = vector.load %arg5[%c0_34, %c0_35] : memref<128x128xbf16, #tpu.memory_space<vmem>>, vector<128x128xbf16>
      %cst_36 = arith.constant dense<0.000000e+00> : vector<2x128xf32>
      %52 = tpu.matmul %50, %51, %cst_36 {dimension_numbers = #tpu.dot_dimension_numbers<[1], [0], [0], [1], [0, 0, 1, 1], [], []>} : vector<2x128xbf16>, vector<128x128xbf16>, vector<2x128xf32> -> vector<2x128xf32>
      %c0_37 = arith.constant 0 : index
      %c0_38 = arith.constant 0 : index
      %53 = vector.load %arg6[%c0_37, %c0_38] : memref<1x128xf32, #tpu.memory_space<vmem>>, vector<1x128xf32>
      %54 = vector.broadcast %53 : vector<1x128xf32> to vector<2x128xf32>
      %55 = arith.addf %52, %54 : vector<2x128xf32>
      %cst_39 = arith.constant 3.000000e+00 : f32
      %56 = vector.broadcast %cst_39 : f32 to vector<2x128xf32>
      %57 = arith.addf %55, %56 : vector<2x128xf32>
      %cst_40 = arith.constant 0.000000e+00 : f32
      %cst_41 = arith.constant 6.000000e+00 : f32
      %58 = vector.broadcast %cst_40 : f32 to vector<2x128xf32>
      %59 = arith.maximumf %58, %57 : vector<2x128xf32>
      %60 = vector.broadcast %cst_41 : f32 to vector<2x128xf32>
      %61 = arith.minimumf %60, %59 : vector<2x128xf32>
      %62 = arith.mulf %55, %61 : vector<2x128xf32>
      %cst_42 = arith.constant 0.166666672 : f32
      %63 = vector.broadcast %cst_42 : f32 to vector<2x128xf32>
      %64 = arith.mulf %62, %63 : vector<2x128xf32>
      %c0_43 = arith.constant 0 : index
      %c0_44 = arith.constant 0 : index
      %65 = vector.load %arg13[%c0_43, %c0_44] : memref<2x128xf32, #tpu.memory_space<vmem>>, vector<2x128xf32>
      tpu.vector_store %arg13[%c0_43, %c0_44], %64 {strides = array<i32>} : memref<2x128xf32, #tpu.memory_space<vmem>>, vector<2x128xf32>,
    } else {
    }
    %c0 = arith.constant 0 : index
    %c0_1 = arith.constant 0 : index
    %c0_2 = arith.constant 0 : index
    %3 = vector.load %arg1[%c0, %c0_1, %c0_2] : memref<2x24x128xf32, #tpu.memory_space<vmem>>, vector<2x24x128xf32>
    %4 = vector.extract_strided_slice %3 {offsets = [0, 0, 0], sizes = [1, 24, 128], strides = [1, 1, 1]} : vector<2x24x128xf32> to vector<1x24x128xf32>
    %5 = vector.broadcast %4 : vector<1x24x128xf32> to vector<2x24x128xf32>
    %6 = arith.subf %3, %5 : vector<2x24x128xf32>
    %7 = math.absf %6 : vector<2x24x128xf32>
    %c0_3 = arith.constant 0 : index
    %c0_4 = arith.constant 0 : index
    %c0_5 = arith.constant 0 : index
    %8 = vector.load %arg12[%c0_3, %c0_4, %c0_5] : memref<2x2x128xf32, #tpu.memory_space<vmem>>, vector<1x2x128xf32>
    %9 = vector.shape_cast %8 : vector<1x2x128xf32> to vector<2x128xf32>
    %cst = arith.constant dense<0.000000e+00> : vector<2x128xf32>
    %10 = vector.multi_reduction <add>, %7, %cst [1] : vector<2x24x128xf32> to vector<2x128xf32>
    %11 = arith.addf %9, %10 : vector<2x128xf32>
    %c0_6 = arith.constant 0 : index
    %c0_7 = arith.constant 0 : index
    %c0_8 = arith.constant 0 : index
    %12 = vector.load %arg12[%c0_6, %c0_7, %c0_8] : memref<2x2x128xf32, #tpu.memory_space<vmem>>, vector<1x2x128xf32>
    %13 = vector.shape_cast %12 : vector<1x2x128xf32> to vector<2x128xf32>
    %14 = vector.shape_cast %11 : vector<2x128xf32> to vector<1x2x128xf32>
    tpu.vector_store %arg12[%c0_6, %c0_7, %c0_8], %14 {strides = array<i32>} : memref<2x2x128xf32, #tpu.memory_space<vmem>>, vector<1x2x128xf32>,
    %15 = vector.extract_strided_slice %3 {offsets = [1, 0, 0], sizes = [1, 24, 128], strides = [1, 1, 1]} : vector<2x24x128xf32> to vector<1x24x128xf32>
    %16 = vector.broadcast %15 : vector<1x24x128xf32> to vector<2x24x128xf32>
    %17 = arith.subf %3, %16 : vector<2x24x128xf32>
    %18 = math.absf %17 : vector<2x24x128xf32>
    %c1 = arith.constant 1 : index
    %c0_9 = arith.constant 0 : index
    %c0_10 = arith.constant 0 : index
    %19 = vector.load %arg12[%c1, %c0_9, %c0_10] : memref<2x2x128xf32, #tpu.memory_space<vmem>>, vector<1x2x128xf32>
    %20 = vector.shape_cast %19 : vector<1x2x128xf32> to vector<2x128xf32>
    %cst_11 = arith.constant dense<0.000000e+00> : vector<2x128xf32>
    %21 = vector.multi_reduction <add>, %18, %cst_11 [1] : vector<2x24x128xf32> to vector<2x128xf32>
    %22 = arith.addf %20, %21 : vector<2x128xf32>
    %c1_12 = arith.constant 1 : index
    %c0_13 = arith.constant 0 : index
    %c0_14 = arith.constant 0 : index
    %23 = vector.load %arg12[%c1_12, %c0_13, %c0_14] : memref<2x2x128xf32, #tpu.memory_space<vmem>>, vector<1x2x128xf32>
    %24 = vector.shape_cast %23 : vector<1x2x128xf32> to vector<2x128xf32>
    %25 = vector.shape_cast %22 : vector<2x128xf32> to vector<1x2x128xf32>
    tpu.vector_store %arg12[%c1_12, %c0_13, %c0_14], %25 {strides = array<i32>} : memref<2x2x128xf32, #tpu.memory_space<vmem>>, vector<1x2x128xf32>,
    %c0_i32_15 = arith.constant 0 : i32
    %26 = arith.cmpi eq, %arg0, %c0_i32_15 : i32
    %27 = arith.extui %26 : i1 to i32
    %c0_i32_16 = arith.constant 0 : i32
    %28 = arith.cmpi ne, %27, %c0_i32_16 : i32
    scf.if %28 {
      %c0_17 = arith.constant 0 : index
      %c0_18 = arith.constant 0 : index
      %c0_19 = arith.constant 0 : index
      %29 = vector.load %arg12[%c0_17, %c0_18, %c0_19] : memref<2x2x128xf32, #tpu.memory_space<vmem>>, vector<2x2x128xf32>
      %cst_20 = arith.constant dense<0.000000e+00> : vector<2x2xf32>
      %30 = vector.multi_reduction <add>, %29, %cst_20 [2] : vector<2x2x128xf32> to vector<2x2xf32>
      %cst_21 = arith.constant 3.25520843E-4 : f32
      %31 = vector.broadcast %cst_21 : f32 to vector<2x2xf32>
      %32 = arith.mulf %30, %31 : vector<2x2xf32>
      %c0_22 = arith.constant 0 : index
      %c0_23 = arith.constant 0 : index
      %33 = vector.load %arg13[%c0_22, %c0_23] : memref<2x128xf32, #tpu.memory_space<vmem>>, vector<2x128xf32>
      %34 = arith.truncf %33 : vector<2x128xf32> to vector<2x128xbf16>
      %c0_24 = arith.constant 0 : index
      %c0_25 = arith.constant 0 : index
      %35 = vector.load %arg7[%c0_24, %c0_25] : memref<128x256xbf16, #tpu.memory_space<vmem>>, vector<128x256xbf16>
      %cst_26 = arith.constant dense<0.000000e+00> : vector<2x256xf32>
      %36 = tpu.matmul %34, %35, %cst_26 {dimension_numbers = #tpu.dot_dimension_numbers<[1], [0], [0], [1], [0, 0, 1, 1], [], []>} : vector<2x128xbf16>, vector<128x256xbf16>, vector<2x256xf32> -> vector<2x256xf32>
      %37 = arith.truncf %32 : vector<2x2xf32> to vector<2x2xbf16>
      %38 = vector.extract_strided_slice %36 {offsets = [0, 128], sizes = [2, 128], strides = [1, 1]} : vector<2x256xf32> to vector<2x128xf32>
      %39 = arith.truncf %38 : vector<2x128xf32> to vector<2x128xbf16>
      %cst_27 = arith.constant dense<0.000000e+00> : vector<2x128xf32>
      %40 = tpu.matmul %37, %39, %cst_27 {dimension_numbers = #tpu.dot_dimension_numbers<[1], [0], [0], [1], [0, 0, 1, 1], [], []>} : vector<2x2xbf16>, vector<2x128xbf16>, vector<2x128xf32> -> vector<2x128xf32>
      %41 = vector.extract_strided_slice %36 {offsets = [0, 0], sizes = [2, 128], strides = [1, 1]} : vector<2x256xf32> to vector<2x128xf32>
      %42 = arith.addf %41, %40 : vector<2x128xf32>
      %c0_28 = arith.constant 0 : index
      %c0_29 = arith.constant 0 : index
      %43 = vector.load %arg8[%c0_28, %c0_29] : memref<1x128xf32, #tpu.memory_space<vmem>>, vector<1x128xf32>
      %44 = vector.broadcast %43 : vector<1x128xf32> to vector<2x128xf32>
      %45 = arith.addf %42, %44 : vector<2x128xf32>
      %cst_30 = arith.constant 0.000000e+00 : f32
      %46 = vector.broadcast %cst_30 : f32 to vector<2x128xf32>
      %47 = arith.maximumf %45, %46 : vector<2x128xf32>
      %48 = arith.truncf %47 : vector<2x128xf32> to vector<2x128xbf16>
      %c0_31 = arith.constant 0 : index
      %c0_32 = arith.constant 0 : index
      %49 = vector.load %arg9[%c0_31, %c0_32] : memref<128x128xbf16, #tpu.memory_space<vmem>>, vector<128x128xbf16>
      %cst_33 = arith.constant dense<0.000000e+00> : vector<2x128xf32>
      %50 = tpu.matmul %48, %49, %cst_33 {dimension_numbers = #tpu.dot_dimension_numbers<[1], [0], [0], [1], [0, 0, 1, 1], [], []>} : vector<2x128xbf16>, vector<128x128xbf16>, vector<2x128xf32> -> vector<2x128xf32>
      %c0_34 = arith.constant 0 : index
      %c0_35 = arith.constant 0 : index
      %51 = vector.load %arg10[%c0_34, %c0_35] : memref<1x128xf32, #tpu.memory_space<vmem>>, vector<1x128xf32>
      %52 = vector.broadcast %51 : vector<1x128xf32> to vector<2x128xf32>
      %53 = arith.addf %50, %52 : vector<2x128xf32>
      %c0_36 = arith.constant 0 : index
      %c0_37 = arith.constant 0 : index
      %54 = vector.load %arg11[%c0_36, %c0_37] : memref<2x128xf32, #tpu.memory_space<vmem>>, vector<2x128xf32>
      tpu.vector_store %arg11[%c0_36, %c0_37], %53 {strides = array<i32>} : memref<2x128xf32, #tpu.memory_space<vmem>>, vector<2x128xf32>,
    } else {
    }
    return
  }
  func.func @transform_0(%arg0: i32) -> (i32, i32, i32) {
    %c0_i32 = arith.constant 0 : i32
    %c0_i32_0 = arith.constant 0 : i32
    %c0_i32_1 = arith.constant 0 : i32
    return %c0_i32, %arg0, %c0_i32_0 : i32, i32, i32
  }
  func.func @transform_1(%arg0: i32) -> (i32, i32) {
    %c0_i32 = arith.constant 0 : i32
    %c0_i32_0 = arith.constant 0 : i32
    %c0_i32_1 = arith.constant 0 : i32
    return %c0_i32, %c0_i32_0 : i32, i32
  }
  func.func @transform_2(%arg0: i32) -> (i32, i32) {
    %c0_i32 = arith.constant 0 : i32
    %c0_i32_0 = arith.constant 0 : i32
    %c0_i32_1 = arith.constant 0 : i32
    return %c0_i32, %c0_i32_0 : i32, i32
  }
  func.func @transform_3(%arg0: i32) -> (i32, i32) {
    %c0_i32 = arith.constant 0 : i32
    %c0_i32_0 = arith.constant 0 : i32
    %c0_i32_1 = arith.constant 0 : i32
    return %c0_i32, %c0_i32_0 : i32, i32
  }
  func.func @transform_4(%arg0: i32) -> (i32, i32) {
    %c0_i32 = arith.constant 0 : i32
    %c0_i32_0 = arith.constant 0 : i32
    %c0_i32_1 = arith.constant 0 : i32
    return %c0_i32, %c0_i32_0 : i32, i32
  }
  func.func @transform_5(%arg0: i32) -> (i32, i32) {
    %c0_i32 = arith.constant 0 : i32
    %c0_i32_0 = arith.constant 0 : i32
    %c0_i32_1 = arith.constant 0 : i32
    return %c0_i32, %c0_i32_0 : i32, i32
  }
  func.func @transform_6(%arg0: i32) -> (i32, i32) {
    %c0_i32 = arith.constant 0 : i32
    %c0_i32_0 = arith.constant 0 : i32
    %c0_i32_1 = arith.constant 0 : i32
    return %c0_i32, %c0_i32_0 : i32, i32
  }
  func.func @transform_7(%arg0: i32) -> (i32, i32) {
    %c0_i32 = arith.constant 0 : i32
    %c0_i32_0 = arith.constant 0 : i32
    %c0_i32_1 = arith.constant 0 : i32
    return %c0_i32, %c0_i32_0 : i32, i32
  }
  func.func @transform_8(%arg0: i32) -> (i32, i32) {
    %c0_i32 = arith.constant 0 : i32
    %c0_i32_0 = arith.constant 0 : i32
    %c0_i32_1 = arith.constant 0 : i32
    return %c0_i32, %c0_i32_0 : i32, i32
  }
  func.func @transform_9(%arg0: i32) -> (i32, i32) {
    %c0_i32 = arith.constant 0 : i32
    %c0_i32_0 = arith.constant 0 : i32
    %c0_i32_1 = arith.constant 0 : i32
    return %c0_i32, %c0_i32_0 : i32, i32
  }
  func.func @transform_10(%arg0: i32) -> (i32, i32) {
    %c0_i32 = arith.constant 0 : i32
    %c0_i32_0 = arith.constant 0 : i32
    %c0_i32_1 = arith.constant 0 : i32
    return %c0_i32, %c0_i32_0 : i32, i32
  }
}

</mosaic_0001>

<llo_original>
// kernel: mobilenet_gnn_forward.1
$region0: #{mobilenet_gnn_forward.1}
  #allocation0 [shape = 'u32[]', space=smem, size = 0x4, offset = 0x4, fixed_abs, tag = 'smem constant byte address 0x4 - core index']
  #allocation1 [shape = 'u32[144,128]{1,0:T(1,128)}', space=vmem, size = 0x12000, scoped, tag = 'internal scratch']
  #allocation2 [shape = 'f32[2,2,128]{2,1,0:T(2,128)}', space=vmem, size = 0x800, scoped, tag = 'scratch operand']
  #allocation3 [shape = 'f32[2,128]{1,0:T(2,128)}', space=vmem, size = 0x400, scoped, tag = 'scratch operand']
  %s0 = inlined_call_operand.vmem [shape: f32[2,24,128], index: 0, kind: input, shape index: {}]
  %s1 = inlined_call_operand.vmem [shape: bf16[128,128], index: 1, kind: input, shape index: {}]
  %s2 = inlined_call_operand.vmem [shape: bf16[128,128], index: 2, kind: input, shape index: {}]
  %s3 = inlined_call_operand.vmem [shape: f32[1,128], index: 3, kind: input, shape index: {}]
  %s4 = inlined_call_operand.vmem [shape: bf16[128,128], index: 4, kind: input, shape index: {}]
  %s5 = inlined_call_operand.vmem [shape: f32[1,128], index: 5, kind: input, shape index: {}]
  %s6 = inlined_call_operand.vmem [shape: bf16[128,256], index: 6, kind: input, shape index: {}]
  %s7 = inlined_call_operand.vmem [shape: f32[1,128], index: 7, kind: input, shape index: {}]
  %s8 = inlined_call_operand.vmem [shape: bf16[128,128], index: 8, kind: input, shape index: {}]
  %s9 = inlined_call_operand.vmem [shape: f32[1,128], index: 9, kind: input, shape index: {}]
  %s10 = inlined_call_operand.hbm [shape: f32[2,128], index: 10, kind: output, shape index: {}]
  %s11 = sld [smem:[#allocation0]]
  $region58: #{mobilenet_gnn_forward.1} parent=0
    _
  %s13 = ssub.s32 1, %s11
  %s14 = scalar_select 0, %s13, %s11
  $region1: #{mobilenet_gnn_forward.1} parent=0
    #allocation4 [shape = 'u8[1024]{0}', space=vmem, size = 0x400, scoped, tag = 'output window, operand 0, single buffered']
    #allocation5 [shape = 's32[1]{0}', space=sflag, size = 0x4, scoped, tag = 'scoped memory for mobilenet_gnn_forward.1']
    %15 = vsyncpa [#allocation5], 0
    // Predicated region
    $region2: #{mobilenet_gnn_forward.1} parent=1 // pred_check
      _
    $region3: #{mobilenet_gnn_forward.1} parent=1 // pred_check_branch
      %17 = sbr.rel (0) target = $region5
    $region4: #{mobilenet_gnn_forward.1} parent=1 // pred_region
      _
    $region5: #{mobilenet_gnn_forward.1} parent=1 // pred_fallthru
      _
    // Predicated region
    $region6: #{mobilenet_gnn_forward.1} parent=1 // pred_check
      _
    $region7: #{mobilenet_gnn_forward.1} parent=1 // pred_check_branch
      %19 = sbr.rel (0) target = $region9
    $region8: #{mobilenet_gnn_forward.1} parent=1 // pred_region
      _
    $region9: #{mobilenet_gnn_forward.1} parent=1 // pred_fallthru
      _
    // Predicated region
    $region10: #{mobilenet_gnn_forward.1} parent=1 // pred_check
      _
    $region11: #{mobilenet_gnn_forward.1} parent=1 // pred_check_branch
      %21 = sbr.rel (0) target = $region13
    $region12: #{mobilenet_gnn_forward.1} parent=1 // pred_region
      _
    $region13: #{mobilenet_gnn_forward.1} parent=1 // pred_fallthru
      _
    // Predicated region
    $region14: #{mobilenet_gnn_forward.1} parent=1 // pred_check
      _
    $region15: #{mobilenet_gnn_forward.1} parent=1 // pred_check_branch
      %23 = sbr.rel (0) target = $region17
    $region16: #{mobilenet_gnn_forward.1} parent=1 // pred_region
      _
    $region17: #{mobilenet_gnn_forward.1} parent=1 // pred_fallthru
      _
    // Predicated region
    $region18: #{mobilenet_gnn_forward.1} parent=1 // pred_check
      _
    $region19: #{mobilenet_gnn_forward.1} parent=1 // pred_check_branch
      %25 = sbr.rel (0) target = $region21
    $region20: #{mobilenet_gnn_forward.1} parent=1 // pred_region
      _
    $region21: #{mobilenet_gnn_forward.1} parent=1 // pred_fallthru
      _
    // Predicated region
    $region22: #{mobilenet_gnn_forward.1} parent=1 // pred_check
      _
    $region23: #{mobilenet_gnn_forward.1} parent=1 // pred_check_branch
      %27 = sbr.rel (0) target = $region25
    $region24: #{mobilenet_gnn_forward.1} parent=1 // pred_region
      _
    $region25: #{mobilenet_gnn_forward.1} parent=1 // pred_fallthru
      _
    // Predicated region
    $region26: #{mobilenet_gnn_forward.1} parent=1 // pred_check
      _
    $region27: #{mobilenet_gnn_forward.1} parent=1 // pred_check_branch
      %29 = sbr.rel (0) target = $region29
    $region28: #{mobilenet_gnn_forward.1} parent=1 // pred_region
      _
    $region29: #{mobilenet_gnn_forward.1} parent=1 // pred_fallthru
      _
    // Predicated region
    $region30: #{mobilenet_gnn_forward.1} parent=1 // pred_check
      _
    $region31: #{mobilenet_gnn_forward.1} parent=1 // pred_check_branch
      %31 = sbr.rel (0) target = $region33
    $region32: #{mobilenet_gnn_forward.1} parent=1 // pred_region
      _
    $region33: #{mobilenet_gnn_forward.1} parent=1 // pred_fallthru
      _
    // Predicated region
    $region34: #{mobilenet_gnn_forward.1} parent=1 // pred_check
      _
    $region35: #{mobilenet_gnn_forward.1} parent=1 // pred_check_branch
      %33 = sbr.rel (0) target = $region37
    $region36: #{mobilenet_gnn_forward.1} parent=1 // pred_region
      _
    $region37: #{mobilenet_gnn_forward.1} parent=1 // pred_fallthru
      _
    // Predicated region
    $region38: #{mobilenet_gnn_forward.1} parent=1 // pred_check
      _
    $region39: #{mobilenet_gnn_forward.1} parent=1 // pred_check_branch
      %35 = sbr.rel (0) target = $region41
    $region40: #{mobilenet_gnn_forward.1} parent=1 // pred_region
      _
    $region41: #{mobilenet_gnn_forward.1} parent=1 // pred_fallthru
      _
    %p37 = scmp.eq.s32.totalorder 0, 0
    // Predicated region
    $region42: #{mobilenet_gnn_forward.1} parent=1 // pred_check
      %p38 = pneg %p37
    $region43: #{mobilenet_gnn_forward.1} parent=1 // pred_check_branch
      %40 = sbr.rel (%p38) target = $region45
    $region44: #{mobilenet_gnn_forward.1} parent=1 // pred_region
      %41 = vst [vmem:[#allocation2] sm:$0x3] 0.0
      %42 = vst [vmem:[#allocation2 + $0x2] sm:$0x3] 0.0
      %v43 = vld [vmem:[%s1] sm:$0xf]
      %v44 = vld [vmem:[%s1 + $0x4] sm:$0xf]
      %v45 = vld [vmem:[%s1 + $0x8] sm:$0xf]
      %v46 = vld [vmem:[%s1 + $0xc] sm:$0xf]
      %v47 = vld [vmem:[%s1 + $0x10] sm:$0xf]
      %v48 = vld [vmem:[%s1 + $0x14] sm:$0xf]
      %v49 = vld [vmem:[%s1 + $0x18] sm:$0xf]
      %v50 = vld [vmem:[%s1 + $0x1c] sm:$0xf]
      %v51 = vld [vmem:[%s1 + $0x20] sm:$0xf]
      %v52 = vld [vmem:[%s1 + $0x24] sm:$0xf]
      %v53 = vld [vmem:[%s1 + $0x28] sm:$0xf]
      %v54 = vld [vmem:[%s1 + $0x2c] sm:$0xf]
      %v55 = vld [vmem:[%s1 + $0x30] sm:$0xf]
      %v56 = vld [vmem:[%s1 + $0x34] sm:$0xf]
      %v57 = vld [vmem:[%s1 + $0x38] sm:$0xf]
      %v58 = vld [vmem:[%s1 + $0x3c] sm:$0xf]
      %v59 = vld [vmem:[%s2] sm:$0xf]
      %v60 = vld [vmem:[%s2 + $0x4] sm:$0xf]
      %v61 = vld [vmem:[%s2 + $0x8] sm:$0xf]
      %v62 = vld [vmem:[%s2 + $0xc] sm:$0xf]
      %v63 = vld [vmem:[%s2 + $0x10] sm:$0xf]
      %v64 = vld [vmem:[%s2 + $0x14] sm:$0xf]
      %v65 = vld [vmem:[%s2 + $0x18] sm:$0xf]
      %v66 = vld [vmem:[%s2 + $0x1c] sm:$0xf]
      %v67 = vld [vmem:[%s2 + $0x20] sm:$0xf]
      %v68 = vld [vmem:[%s2 + $0x24] sm:$0xf]
      %v69 = vld [vmem:[%s2 + $0x28] sm:$0xf]
      %v70 = vld [vmem:[%s2 + $0x2c] sm:$0xf]
      %v71 = vld [vmem:[%s2 + $0x30] sm:$0xf]
      %v72 = vld [vmem:[%s2 + $0x34] sm:$0xf]
      %v73 = vld [vmem:[%s2 + $0x38] sm:$0xf]
      %v74 = vld [vmem:[%s2 + $0x3c] sm:$0xf]
      %v75 = vld [vmem:[%s3] sm:$0x1]
      %v77 = vlaneseq
      %v78 = vshrl.u32 %v77, 7
      %v79 = vsub.s32 0, %v78
      %v80 = vrot.slane %v75, %v79
      %v98 = vunpack.c.l.b16 %v43
      %v99 = vunpack.c.l.b16 %v44
      %v100 = vunpack.c.l.b16 %v45
      %v101 = vunpack.c.l.b16 %v46
      %v102 = vunpack.c.l.b16 %v47
      %v103 = vunpack.c.l.b16 %v48
      %v104 = vunpack.c.l.b16 %v49
      %v105 = vunpack.c.l.b16 %v50
      %v106 = vunpack.c.l.b16 %v51
      %v107 = vunpack.c.l.b16 %v52
      %v108 = vunpack.c.l.b16 %v53
      %v109 = vunpack.c.l.b16 %v54
      %v110 = vunpack.c.l.b16 %v55
      %v111 = vunpack.c.l.b16 %v56
      %v112 = vunpack.c.l.b16 %v57
      %v113 = vunpack.c.l.b16 %v58
      %v114 = vpack.c.b16 %v99, %v98
      %v115 = vpack.c.b16 %v101, %v100
      %v116 = vpack.c.b16 %v103, %v102
      %v117 = vpack.c.b16 %v105, %v104
      %v118 = vpack.c.b16 %v107, %v106
      %v119 = vpack.c.b16 %v109, %v108
      %v120 = vpack.c.b16 %v111, %v110
      %v121 = vpack.c.b16 %v113, %v112
      %v146 = vunpack.c.l.b16 %v59
      %v147 = vunpack.c.l.b16 %v60
      %v148 = vunpack.c.l.b16 %v61
      %v149 = vunpack.c.l.b16 %v62
      %v150 = vunpack.c.l.b16 %v63
      %v151 = vunpack.c.l.b16 %v64
      %v152 = vunpack.c.l.b16 %v65
      %v153 = vunpack.c.l.b16 %v66
      %v154 = vunpack.c.l.b16 %v67
      %v155 = vunpack.c.l.b16 %v68
      %v156 = vunpack.c.l.b16 %v69
      %v157 = vunpack.c.l.b16 %v70
      %v158 = vunpack.c.l.b16 %v71
      %v159 = vunpack.c.l.b16 %v72
      %v160 = vunpack.c.l.b16 %v73
      %v161 = vunpack.c.l.b16 %v74
      %v162 = vpack.c.b16 %v147, %v146
      %v163 = vpack.c.b16 %v149, %v148
      %v164 = vpack.c.b16 %v151, %v150
      %v165 = vpack.c.b16 %v153, %v152
      %v166 = vpack.c.b16 %v155, %v154
      %v167 = vpack.c.b16 %v157, %v156
      %v168 = vpack.c.b16 %v159, %v158
      %v169 = vpack.c.b16 %v161, %v160
      %178 = vmatprep.subr.bf16.mxu0 0
      %179 = vmatpush1.bf16.msra.mxu0 %v169
      %180 = vmatprep.subr.bf16.mxu0 0
      %181 = vmatpush1.bf16.msra.mxu0 %v168
      %182 = vmatprep.subr.bf16.mxu0 0
      %183 = vmatpush1.bf16.msra.mxu0 %v167
      %184 = vmatprep.subr.bf16.mxu0 0
      %185 = vmatpush1.bf16.msra.mxu0 %v166
      %186 = vmatprep.subr.bf16.mxu0 0
      %187 = vmatpush1.bf16.msra.mxu0 %v165
      %188 = vmatprep.subr.bf16.mxu0 0
      %189 = vmatpush1.bf16.msra.mxu0 %v164
      %190 = vmatprep.subr.bf16.mxu0 0
      %191 = vmatpush1.bf16.msra.mxu0 %v163
      %192 = vmatprep.subr.bf16.mxu0 0
      %193 = vmatpush1.bf16.msra.mxu0 %v162
      %194 = vmatprep.subr.bf16.mxu0 0
      %195 = vmatpush2.bf16.msra.mxu0 0
      %196 = vmatprep.subr.bf16.mxu0 0
      %197 = vmatpush2.bf16.msra.mxu0 0
      %198 = vmatprep.subr.bf16.mxu0 0
      %199 = vmatpush2.bf16.msra.mxu0 0
      %200 = vmatprep.subr.bf16.mxu0 0
      %201 = vmatpush2.bf16.msra.mxu0 0
      %202 = vmatprep.subr.bf16.mxu0 0
      %203 = vmatpush2.bf16.msra.mxu0 0
      %204 = vmatprep.subr.bf16.mxu0 0
      %205 = vmatpush2.bf16.msra.mxu0 0
      %206 = vmatprep.subr.bf16.mxu0 0
      %207 = vmatpush2.bf16.msra.mxu0 0
      %208 = vmatprep.subr.bf16.mxu0 0
      %209 = vmatpush2.bf16.msra.mxu0 0
      %210 = vmatprep.mubr.bf16.mxu0 0
      %211 = vmatmul.mubr.bf16.gmra.mxu0 %v114
      %v212 = vpop.f32.mrf.mxu0
      %v213 = vadd.f32 %v80, %v212
      %v214 = vpop.f32.mrf.mxu0
      %v215 = vpop.f32.mrf.mxu0
      %v216 = vadd.f32 %v80, %v215
      %v217 = vpop.f32.mrf.mxu0
      %218 = vmatprep.mubr.bf16.mxu0 0
      %219 = vmatmul.mubr.bf16.gmra.mxu0 %v115
      %v220 = vpop.f32.mrf.mxu0
      %v221 = vadd.f32 %v80, %v220
      %v222 = vpop.f32.mrf.mxu0
      %v223 = vpop.f32.mrf.mxu0
      %v224 = vadd.f32 %v80, %v223
      %v225 = vpop.f32.mrf.mxu0
      %226 = vmatprep.mubr.bf16.mxu0 0
      %227 = vmatmul.mubr.bf16.gmra.mxu0 %v116
      %v228 = vpop.f32.mrf.mxu0
      %v229 = vadd.f32 %v80, %v228
      %v230 = vpop.f32.mrf.mxu0
      %v231 = vpop.f32.mrf.mxu0
      %v232 = vadd.f32 %v80, %v231
      %v233 = vpop.f32.mrf.mxu0
      %234 = vmatprep.mubr.bf16.mxu0 0
      %235 = vmatmul.mubr.bf16.gmra.mxu0 %v117
      %v236 = vpop.f32.mrf.mxu0
      %v237 = vadd.f32 %v80, %v236
      %v238 = vpop.f32.mrf.mxu0
      %v239 = vpop.f32.mrf.mxu0
      %v240 = vadd.f32 %v80, %v239
      %v241 = vpop.f32.mrf.mxu0
      %242 = vmatprep.mubr.bf16.mxu0 0
      %243 = vmatmul.mubr.bf16.gmra.mxu0 %v118
      %v244 = vpop.f32.mrf.mxu0
      %v245 = vadd.f32 %v80, %v244
      %v246 = vpop.f32.mrf.mxu0
      %v247 = vpop.f32.mrf.mxu0
      %v248 = vadd.f32 %v80, %v247
      %v249 = vpop.f32.mrf.mxu0
      %250 = vmatprep.mubr.bf16.mxu0 0
      %251 = vmatmul.mubr.bf16.gmra.mxu0 %v119
      %v252 = vpop.f32.mrf.mxu0
      %v253 = vadd.f32 %v80, %v252
      %v254 = vpop.f32.mrf.mxu0
      %v255 = vpop.f32.mrf.mxu0
      %v256 = vadd.f32 %v80, %v255
      %v257 = vpop.f32.mrf.mxu0
      %258 = vmatprep.mubr.bf16.mxu0 0
      %259 = vmatmul.mubr.bf16.gmra.mxu0 %v120
      %v260 = vpop.f32.mrf.mxu0
      %v261 = vadd.f32 %v80, %v260
      %v262 = vpop.f32.mrf.mxu0
      %v263 = vpop.f32.mrf.mxu0
      %v264 = vadd.f32 %v80, %v263
      %v265 = vpop.f32.mrf.mxu0
      %266 = vmatprep.mubr.bf16.mxu0 0
      %267 = vmatmul.mubr.bf16.gmra.mxu0 %v121
      %v268 = vpop.f32.mrf.mxu0
      %v269 = vadd.f32 %v80, %v268
      %v270 = vpop.f32.mrf.mxu0
      %v271 = vpop.f32.mrf.mxu0
      %v272 = vadd.f32 %v80, %v271
      %v273 = vpop.f32.mrf.mxu0
      %274 = vdwg.mxu0
      %v275 = vadd.f32 %v213, 3.0
      %v276 = vadd.f32 %v216, 3.0
      %v277 = vadd.f32 %v221, 3.0
      %v278 = vadd.f32 %v224, 3.0
      %v279 = vadd.f32 %v229, 3.0
      %v280 = vadd.f32 %v232, 3.0
      %v281 = vadd.f32 %v237, 3.0
      %v282 = vadd.f32 %v240, 3.0
      %v283 = vadd.f32 %v245, 3.0
      %v284 = vadd.f32 %v248, 3.0
      %v285 = vadd.f32 %v253, 3.0
      %v286 = vadd.f32 %v256, 3.0
      %v287 = vadd.f32 %v261, 3.0
      %v288 = vadd.f32 %v264, 3.0
      %v289 = vadd.f32 %v269, 3.0
      %v290 = vadd.f32 %v272, 3.0
      %v291 = vmax.f32 %v275, 0.0
      %v292 = vmax.f32 %v276, 0.0
      %v293 = vmax.f32 %v277, 0.0
      %v294 = vmax.f32 %v278, 0.0
      %v295 = vmax.f32 %v279, 0.0
      %v296 = vmax.f32 %v280, 0.0
      %v297 = vmax.f32 %v281, 0.0
      %v298 = vmax.f32 %v282, 0.0
      %v299 = vmax.f32 %v283, 0.0
      %v300 = vmax.f32 %v284, 0.0
      %v301 = vmax.f32 %v285, 0.0
      %v302 = vmax.f32 %v286, 0.0
      %v303 = vmax.f32 %v287, 0.0
      %v304 = vmax.f32 %v288, 0.0
      %v305 = vmax.f32 %v289, 0.0
      %v306 = vmax.f32 %v290, 0.0
      %v307 = vmin.f32 %v291, 6.0
      %v308 = vmin.f32 %v292, 6.0
      %v309 = vmin.f32 %v293, 6.0
      %v310 = vmin.f32 %v294, 6.0
      %v311 = vmin.f32 %v295, 6.0
      %v312 = vmin.f32 %v296, 6.0
      %v313 = vmin.f32 %v297, 6.0
      %v314 = vmin.f32 %v298, 6.0
      %v315 = vmin.f32 %v299, 6.0
      %v316 = vmin.f32 %v300, 6.0
      %v317 = vmin.f32 %v301, 6.0
      %v318 = vmin.f32 %v302, 6.0
      %v319 = vmin.f32 %v303, 6.0
      %v320 = vmin.f32 %v304, 6.0
      %v321 = vmin.f32 %v305, 6.0
      %v322 = vmin.f32 %v306, 6.0
      %v323 = vmul.f32 %v213, %v307
      %v324 = vmul.f32 %v216, %v308
      %v325 = vmul.f32 %v221, %v309
      %v326 = vmul.f32 %v224, %v310
      %v327 = vmul.f32 %v229, %v311
      %v328 = vmul.f32 %v232, %v312
      %v329 = vmul.f32 %v237, %v313
      %v330 = vmul.f32 %v240, %v314
      %v331 = vmul.f32 %v245, %v315
      %v332 = vmul.f32 %v248, %v316
      %v333 = vmul.f32 %v253, %v317
      %v334 = vmul.f32 %v256, %v318
      %v335 = vmul.f32 %v261, %v319
      %v336 = vmul.f32 %v264, %v320
      %v337 = vmul.f32 %v269, %v321
      %v338 = vmul.f32 %v272, %v322
      %v339 = vmul.f32 %v323, 0.16666667
      %v340 = vmul.f32 %v324, 0.16666667
      %v341 = vmul.f32 %v325, 0.16666667
      %v342 = vmul.f32 %v326, 0.16666667
      %v343 = vmul.f32 %v327, 0.16666667
      %v344 = vmul.f32 %v328, 0.16666667
      %v345 = vmul.f32 %v329, 0.16666667
      %v346 = vmul.f32 %v330, 0.16666667
      %v347 = vmul.f32 %v331, 0.16666667
      %v348 = vmul.f32 %v332, 0.16666667
      %v349 = vmul.f32 %v333, 0.16666667
      %v350 = vmul.f32 %v334, 0.16666667
      %v351 = vmul.f32 %v335, 0.16666667
      %v352 = vmul.f32 %v336, 0.16666667
      %v353 = vmul.f32 %v337, 0.16666667
      %v354 = vmul.f32 %v338, 0.16666667
      %v355 = vadd.f32 %v339, %v340
      %v356 = vadd.f32 %v355, %v341
      %v357 = vadd.f32 %v356, %v342
      %v358 = vadd.f32 %v357, %v343
      %v359 = vadd.f32 %v358, %v344
      %v360 = vadd.f32 %v359, %v345
      %v361 = vadd.f32 %v360, %v346
      %v362 = vrot.slane %v361, 4
      %v363 = vadd.f32 %v361, %v362
      %v364 = vrot.slane %v363, 2
      %v365 = vadd.f32 %v363, %v364
      %v366 = vrot.slane %v365, 1
      %v367 = vadd.f32 %v365, %v366
      %v368 = vadd.f32 %v347, %v348
      %v369 = vadd.f32 %v368, %v349
      %v370 = vadd.f32 %v369, %v350
      %v371 = vadd.f32 %v370, %v351
      %v372 = vadd.f32 %v371, %v352
      %v373 = vadd.f32 %v372, %v353
      %v374 = vadd.f32 %v373, %v354
      %v375 = vrot.slane %v374, 4
      %v376 = vadd.f32 %v374, %v375
      %v377 = vrot.slane %v376, 2
      %v378 = vadd.f32 %v376, %v377
      %v379 = vrot.slane %v378, 1
      %v380 = vadd.f32 %v378, %v379
      %v381 = vrcp.pop 64.0
      %v382 = vmul.f32 %v367, %v381
      %v383 = vmul.f32 %v380, %v381
      %v384 = vpack.c.bf16 %v382, %v382
      %v385 = vpack.c.bf16 %v383, %v383
      %v386 = vld [vmem:[%s4] sm:$0xf]
      %v387 = vld [vmem:[%s4 + $0x4] sm:$0xf]
      %v388 = vld [vmem:[%s4 + $0x8] sm:$0xf]
      %v389 = vld [vmem:[%s4 + $0xc] sm:$0xf]
      %v390 = vld [vmem:[%s4 + $0x10] sm:$0xf]
      %v391 = vld [vmem:[%s4 + $0x14] sm:$0xf]
      %v392 = vld [vmem:[%s4 + $0x18] sm:$0xf]
      %v393 = vld [vmem:[%s4 + $0x1c] sm:$0xf]
      %v394 = vld [vmem:[%s4 + $0x20] sm:$0xf]
      %v395 = vld [vmem:[%s4 + $0x24] sm:$0xf]
      %v396 = vld [vmem:[%s4 + $0x28] sm:$0xf]
      %v397 = vld [vmem:[%s4 + $0x2c] sm:$0xf]
      %v398 = vld [vmem:[%s4 + $0x30] sm:$0xf]
      %v399 = vld [vmem:[%s4 + $0x34] sm:$0xf]
      %v400 = vld [vmem:[%s4 + $0x38] sm:$0xf]
      %v401 = vld [vmem:[%s4 + $0x3c] sm:$0xf]
      %v402 = vld [vmem:[%s5] sm:$0x1]
      %v404 = vlaneseq
      %v405 = vshrl.u32 %v404, 7
      %v406 = vsub.s32 0, %v405
      %v407 = vrot.slane %v402, %v406
      %v411 = vunpack.c.l.b16 %v384
      %v412 = vunpack.c.l.b16 %v385
      %vm413 = vcmask 1041409
      %v414 = vsel %vm413, %v412, %v411
      %v415 = vpack.c.b16 %v414, %v414
      %v433 = vunpack.c.l.b16 %v386
      %v434 = vunpack.c.l.b16 %v387
      %v435 = vunpack.c.l.b16 %v388
      %v436 = vunpack.c.l.b16 %v389
      %v437 = vunpack.c.l.b16 %v390
      %v438 = vunpack.c.l.b16 %v391
      %v439 = vunpack.c.l.b16 %v392
      %v440 = vunpack.c.l.b16 %v393
      %v441 = vunpack.c.l.b16 %v394
      %v442 = vunpack.c.l.b16 %v395
      %v443 = vunpack.c.l.b16 %v396
      %v444 = vunpack.c.l.b16 %v397
      %v445 = vunpack.c.l.b16 %v398
      %v446 = vunpack.c.l.b16 %v399
      %v447 = vunpack.c.l.b16 %v400
      %v448 = vunpack.c.l.b16 %v401
      %v449 = vpack.c.b16 %v434, %v433
      %v450 = vpack.c.b16 %v436, %v435
      %v451 = vpack.c.b16 %v438, %v437
      %v452 = vpack.c.b16 %v440, %v439
      %v453 = vpack.c.b16 %v442, %v441
      %v454 = vpack.c.b16 %v444, %v443
      %v455 = vpack.c.b16 %v446, %v445
      %v456 = vpack.c.b16 %v448, %v447
      %465 = vmatprep.subr.bf16.mxu0 0
      %466 = vmatpush1.bf16.msra.mxu0 %v456
      %467 = vmatprep.subr.bf16.mxu0 0
      %468 = vmatpush1.bf16.msra.mxu0 %v455
      %469 = vmatprep.subr.bf16.mxu0 0
      %470 = vmatpush1.bf16.msra.mxu0 %v454
      %471 = vmatprep.subr.bf16.mxu0 0
      %472 = vmatpush1.bf16.msra.mxu0 %v453
      %473 = vmatprep.subr.bf16.mxu0 0
      %474 = vmatpush1.bf16.msra.mxu0 %v452
      %475 = vmatprep.subr.bf16.mxu0 0
      %476 = vmatpush1.bf16.msra.mxu0 %v451
      %477 = vmatprep.subr.bf16.mxu0 0
      %478 = vmatpush1.bf16.msra.mxu0 %v450
      %479 = vmatprep.subr.bf16.mxu0 0
      %480 = vmatpush1.bf16.msra.mxu0 %v449
      %481 = vmatprep.subr.bf16.mxu0 0
      %482 = vmatpush2.bf16.msra.mxu0 0
      %483 = vmatprep.subr.bf16.mxu0 0
      %484 = vmatpush2.bf16.msra.mxu0 0
      %485 = vmatprep.subr.bf16.mxu0 0
      %486 = vmatpush2.bf16.msra.mxu0 0
      %487 = vmatprep.subr.bf16.mxu0 0
      %488 = vmatpush2.bf16.msra.mxu0 0
      %489 = vmatprep.subr.bf16.mxu0 0
      %490 = vmatpush2.bf16.msra.mxu0 0
      %491 = vmatprep.subr.bf16.mxu0 0
      %492 = vmatpush2.bf16.msra.mxu0 0
      %493 = vmatprep.subr.bf16.mxu0 0
      %494 = vmatpush2.bf16.msra.mxu0 0
      %495 = vmatprep.subr.bf16.mxu0 0
      %496 = vmatpush2.bf16.msra.mxu0 0
      %497 = vmatprep.mubr.bf16.mxu0 0
      %498 = vmatmul.mubr.bf16.gmra.mxu0 %v415
      %v499 = vpop.f32.mrf.mxu0
      %v500 = vadd.f32 %v407, %v499
      %v501 = vpop.f32.mrf.mxu0
      %v502 = vpop.f32.mrf.mxu0
      %v503 = vpop.f32.mrf.mxu0
      %504 = vdwg.mxu0
      %v505 = vadd.f32 %v500, 3.0
      %v506 = vmax.f32 %v505, 0.0
      %v507 = vmin.f32 %v506, 6.0
      %v508 = vmul.f32 %v500, %v507
      %v509 = vmul.f32 %v508, 0.16666667
      %510 = vst [vmem:[#allocation3] sm:$0x3] %v509
    $region45: #{mobilenet_gnn_forward.1} parent=1 // pred_fallthru
      _
    %v511 = vld [vmem:[%s0] sm:$0xff]
    %v512 = vld [vmem:[%s0 + $0x8] sm:$0xff]
    %v513 = vld [vmem:[%s0 + $0x10] sm:$0xff]
    %v514 = vld [vmem:[%s0 + $0x18] sm:$0xff]
    %v515 = vld [vmem:[%s0 + $0x20] sm:$0xff]
    %v516 = vld [vmem:[%s0 + $0x28] sm:$0xff]
    %v517 = vsub.f32 %v511, %v511
    %v518 = vsub.f32 %v512, %v512
    %v519 = vsub.f32 %v513, %v513
    %v520 = vsub.f32 %v514, %v511
    %v521 = vsub.f32 %v515, %v512
    %v522 = vsub.f32 %v516, %v513
    %v523 = vand.u32 2147483647, %v517
    %v524 = vand.u32 2147483647, %v518
    %v525 = vand.u32 2147483647, %v519
    %v526 = vand.u32 2147483647, %v520
    %v527 = vand.u32 2147483647, %v521
    %v528 = vand.u32 2147483647, %v522
    %v529 = vld [vmem:[#allocation2] sm:$0x3]
    %v530 = vadd.f32 %v523, %v524
    %v531 = vadd.f32 %v530, %v525
    %v532 = vrot.slane %v531, 4
    %v533 = vadd.f32 %v531, %v532
    %v534 = vrot.slane %v533, 2
    %v535 = vadd.f32 %v533, %v534
    %v536 = vrot.slane %v535, 1
    %v537 = vadd.f32 %v535, %v536
    %v538 = vadd.f32 %v526, %v527
    %v539 = vadd.f32 %v538, %v528
    %v540 = vrot.slane %v539, 4
    %v541 = vadd.f32 %v539, %v540
    %v542 = vrot.slane %v541, 2
    %v543 = vadd.f32 %v541, %v542
    %v544 = vrot.slane %v543, 1
    %v545 = vadd.f32 %v543, %v544
    %vm548 = vcmask 1041409
    %v549 = vsel %vm548, %v545, %v537
    %v551 = vadd.f32 %v529, %v549
    %552 = vst [vmem:[#allocation2] sm:$0x3] %v551
    %v553 = vsub.f32 %v511, %v514
    %v554 = vsub.f32 %v512, %v515
    %v555 = vsub.f32 %v513, %v516
    %v556 = vsub.f32 %v514, %v514
    %v557 = vsub.f32 %v515, %v515
    %v558 = vsub.f32 %v516, %v516
    %v559 = vand.u32 2147483647, %v553
    %v560 = vand.u32 2147483647, %v554
    %v561 = vand.u32 2147483647, %v555
    %v562 = vand.u32 2147483647, %v556
    %v563 = vand.u32 2147483647, %v557
    %v564 = vand.u32 2147483647, %v558
    %s565 = scalar_lea.vmem [#allocation2], 2
    %v566 = vld [vmem:[%s565] sm:$0x3]
    %v567 = vadd.f32 %v559, %v560
    %v568 = vadd.f32 %v567, %v561
    %v569 = vrot.slane %v568, 4
    %v570 = vadd.f32 %v568, %v569
    %v571 = vrot.slane %v570, 2
    %v572 = vadd.f32 %v570, %v571
    %v573 = vrot.slane %v572, 1
    %v574 = vadd.f32 %v572, %v573
    %v575 = vadd.f32 %v562, %v563
    %v576 = vadd.f32 %v575, %v564
    %v577 = vrot.slane %v576, 4
    %v578 = vadd.f32 %v576, %v577
    %v579 = vrot.slane %v578, 2
    %v580 = vadd.f32 %v578, %v579
    %v581 = vrot.slane %v580, 1
    %v582 = vadd.f32 %v580, %v581
    %v585 = vsel %vm548, %v582, %v574
    %v587 = vadd.f32 %v566, %v585
    %588 = vst [vmem:[%s565] sm:$0x3] %v587
    // Predicated region
    $region46: #{mobilenet_gnn_forward.1} parent=1 // pred_check
      %p589 = pneg %p37
    $region47: #{mobilenet_gnn_forward.1} parent=1 // pred_check_branch
      %591 = sbr.rel (%p589) target = $region49
    $region48: #{mobilenet_gnn_forward.1} parent=1 // pred_region
      %v592 = vld [vmem:[#allocation2] sm:$0x3]
      %v593 = vld [vmem:[#allocation2 + $0x2] sm:$0x3]
      %vm594 = vcmask 1041408
      %v595 = vsel %vm594, %v592, 0.0
      %596 = vadd.xlane.f32.xlu0 %v595
      %v597 = vpop.xlane.xlu0 %596
      %v598 = vsel %vm594, %v593, 0.0
      %599 = vadd.xlane.f32.xlu0 %v598
      %v600 = vpop.xlane.xlu0 %599
      %v601 = vmul.f32 %v597, 0.00032552084
      %v602 = vmul.f32 %v600, 0.00032552084
      %v603 = vld [vmem:[#allocation3] sm:$0x3]
      %v604 = vpack.c.bf16 %v603, %v603
      %v605 = vld [vmem:[%s6] sm:$0xff]
      %v606 = vld [vmem:[%s6 + $0x8] sm:$0xff]
      %v607 = vld [vmem:[%s6 + $0x10] sm:$0xff]
      %v608 = vld [vmem:[%s6 + $0x18] sm:$0xff]
      %v609 = vld [vmem:[%s6 + $0x20] sm:$0xff]
      %v610 = vld [vmem:[%s6 + $0x28] sm:$0xff]
      %v611 = vld [vmem:[%s6 + $0x30] sm:$0xff]
      %v612 = vld [vmem:[%s6 + $0x38] sm:$0xff]
      %v613 = vld [vmem:[%s6 + $0x40] sm:$0xff]
      %v614 = vld [vmem:[%s6 + $0x48] sm:$0xff]
      %v615 = vld [vmem:[%s6 + $0x50] sm:$0xff]
      %v616 = vld [vmem:[%s6 + $0x58] sm:$0xff]
      %v617 = vld [vmem:[%s6 + $0x60] sm:$0xff]
      %v618 = vld [vmem:[%s6 + $0x68] sm:$0xff]
      %v619 = vld [vmem:[%s6 + $0x70] sm:$0xff]
      %v620 = vld [vmem:[%s6 + $0x78] sm:$0xff]
      %v637 = vunpack.c.l.b16 %v605
      %v638 = vunpack.c.h.b16 %v605
      %v639 = vunpack.c.l.b16 %v606
      %v640 = vunpack.c.h.b16 %v606
      %v641 = vunpack.c.l.b16 %v607
      %v642 = vunpack.c.h.b16 %v607
      %v643 = vunpack.c.l.b16 %v608
      %v644 = vunpack.c.h.b16 %v608
      %v645 = vunpack.c.l.b16 %v609
      %v646 = vunpack.c.h.b16 %v609
      %v647 = vunpack.c.l.b16 %v610
      %v648 = vunpack.c.h.b16 %v610
      %v649 = vunpack.c.l.b16 %v611
      %v650 = vunpack.c.h.b16 %v611
      %v651 = vunpack.c.l.b16 %v612
      %v652 = vunpack.c.h.b16 %v612
      %v653 = vunpack.c.l.b16 %v613
      %v654 = vunpack.c.h.b16 %v613
      %v655 = vunpack.c.l.b16 %v614
      %v656 = vunpack.c.h.b16 %v614
      %v657 = vunpack.c.l.b16 %v615
      %v658 = vunpack.c.h.b16 %v615
      %v659 = vunpack.c.l.b16 %v616
      %v660 = vunpack.c.h.b16 %v616
      %v661 = vunpack.c.l.b16 %v617
      %v662 = vunpack.c.h.b16 %v617
      %v663 = vunpack.c.l.b16 %v618
      %v664 = vunpack.c.h.b16 %v618
      %v665 = vunpack.c.l.b16 %v619
      %v666 = vunpack.c.h.b16 %v619
      %v667 = vunpack.c.l.b16 %v620
      %v668 = vunpack.c.h.b16 %v620
      %v669 = vpack.c.b16 %v639, %v637
      %v670 = vpack.c.b16 %v640, %v638
      %v671 = vpack.c.b16 %v643, %v641
      %v672 = vpack.c.b16 %v644, %v642
      %v673 = vpack.c.b16 %v647, %v645
      %v674 = vpack.c.b16 %v648, %v646
      %v675 = vpack.c.b16 %v651, %v649
      %v676 = vpack.c.b16 %v652, %v650
      %v677 = vpack.c.b16 %v655, %v653
      %v678 = vpack.c.b16 %v656, %v654
      %v679 = vpack.c.b16 %v659, %v657
      %v680 = vpack.c.b16 %v660, %v658
      %v681 = vpack.c.b16 %v663, %v661
      %v682 = vpack.c.b16 %v664, %v662
      %v683 = vpack.c.b16 %v667, %v665
      %v684 = vpack.c.b16 %v668, %v666
      %701 = vmatprep.subr.bf16.mxu0 %v684
      %702 = vmatpush1.bf16.msra.mxu0 %v683
      %703 = vmatprep.subr.bf16.mxu0 %v682
      %704 = vmatpush1.bf16.msra.mxu0 %v681
      %705 = vmatprep.subr.bf16.mxu0 %v680
      %706 = vmatpush1.bf16.msra.mxu0 %v679
      %707 = vmatprep.subr.bf16.mxu0 %v678
      %708 = vmatpush1.bf16.msra.mxu0 %v677
      %709 = vmatprep.subr.bf16.mxu0 %v676
      %710 = vmatpush1.bf16.msra.mxu0 %v675
      %711 = vmatprep.subr.bf16.mxu0 %v674
      %712 = vmatpush1.bf16.msra.mxu0 %v673
      %713 = vmatprep.subr.bf16.mxu0 %v672
      %714 = vmatpush1.bf16.msra.mxu0 %v671
      %715 = vmatprep.subr.bf16.mxu0 %v670
      %716 = vmatpush1.bf16.msra.mxu0 %v669
      %717 = vmatprep.subr.bf16.mxu0 0
      %718 = vmatpush2.bf16.msra.mxu0 0
      %719 = vmatprep.subr.bf16.mxu0 0
      %720 = vmatpush2.bf16.msra.mxu0 0
      %721 = vmatprep.subr.bf16.mxu0 0
      %722 = vmatpush2.bf16.msra.mxu0 0
      %723 = vmatprep.subr.bf16.mxu0 0
      %724 = vmatpush2.bf16.msra.mxu0 0
      %725 = vmatprep.subr.bf16.mxu0 0
      %726 = vmatpush2.bf16.msra.mxu0 0
      %727 = vmatprep.subr.bf16.mxu0 0
      %728 = vmatpush2.bf16.msra.mxu0 0
      %729 = vmatprep.subr.bf16.mxu0 0
      %730 = vmatpush2.bf16.msra.mxu0 0
      %731 = vmatprep.subr.bf16.mxu0 0
      %732 = vmatpush2.bf16.msra.mxu0 0
      %733 = vmatprep.mubr.bf16.mxu0 0
      %734 = vmatmul.mubr.bf16.gmra.mxu0 %v604
      %v735 = vpop.f32.mrf.mxu0
      %v736 = vadd.f32 0.0, %v735
      %v737 = vpop.f32.mrf.mxu0
      %v738 = vadd.f32 0.0, %v737
      %v739 = vpop.f32.mrf.mxu0
      %v740 = vpop.f32.mrf.mxu0
      %741 = vdwg.mxu0
      %v742 = vpack.c.bf16 %v601, %v601
      %v743 = vpack.c.bf16 %v602, %v602
      %v744 = vpack.c.bf16 %v738, %v738
      %v747 = vunpack.c.l.b16 %v742
      %v748 = vunpack.c.l.b16 %v743
      %v749 = vlaneseq
      %v750 = vand.u32 %v749, 127
      %v751 = vlaneseq
      %v752 = vshrl.u32 %v751, 7
      %v753 = vsub.s32 %v750, %v752
      %v754 = vrot.slane %v747, %v753
      %v755 = vlaneseq
      %v756 = vshrl.u32 %v755, 7
      %v757 = vsub.s32 %v750, %v756
      %v758 = vrot.slane %v748, %v757
      %v759 = vsel %vm548, %v758, %v754
      %v760 = vpack.c.b16 %v759, %v759
      %vm761 = vcmask 15360
      %v763 = vsel %vm761, %v760, 0
      %vm765 = vcmask 1040384
      %v767 = vsel %vm765, %v744, 0
      %769 = vmatprep.subr.bf16.mxu0 0
      %770 = vmatpush1.bf16.msra.mxu0 0
      %771 = vmatprep.subr.bf16.mxu0 0
      %772 = vmatpush1.bf16.msra.mxu0 0
      %773 = vmatprep.subr.bf16.mxu0 0
      %774 = vmatpush1.bf16.msra.mxu0 0
      %775 = vmatprep.subr.bf16.mxu0 0
      %776 = vmatpush1.bf16.msra.mxu0 0
      %777 = vmatprep.subr.bf16.mxu0 0
      %778 = vmatpush1.bf16.msra.mxu0 0
      %779 = vmatprep.subr.bf16.mxu0 0
      %780 = vmatpush1.bf16.msra.mxu0 0
      %781 = vmatprep.subr.bf16.mxu0 0
      %782 = vmatpush1.bf16.msra.mxu0 0
      %783 = vmatprep.subr.bf16.mxu0 0
      %784 = vmatpush1.bf16.msra.mxu0 %v767
      %785 = vmatprep.subr.bf16.mxu0 0
      %786 = vmatpush2.bf16.msra.mxu0 0
      %787 = vmatprep.subr.bf16.mxu0 0
      %788 = vmatpush2.bf16.msra.mxu0 0
      %789 = vmatprep.subr.bf16.mxu0 0
      %790 = vmatpush2.bf16.msra.mxu0 0
      %791 = vmatprep.subr.bf16.mxu0 0
      %792 = vmatpush2.bf16.msra.mxu0 0
      %793 = vmatprep.subr.bf16.mxu0 0
      %794 = vmatpush2.bf16.msra.mxu0 0
      %795 = vmatprep.subr.bf16.mxu0 0
      %796 = vmatpush2.bf16.msra.mxu0 0
      %797 = vmatprep.subr.bf16.mxu0 0
      %798 = vmatpush2.bf16.msra.mxu0 0
      %799 = vmatprep.subr.bf16.mxu0 0
      %800 = vmatpush2.bf16.msra.mxu0 0
      %801 = vmatprep.mubr.bf16.mxu0 0
      %802 = vmatmul.mubr.bf16.gmra.mxu0 %v763
      %v803 = vpop.f32.mrf.mxu0
      %v804 = vadd.f32 0.0, %v803
      %v805 = vpop.f32.mrf.mxu0
      %v806 = vpop.f32.mrf.mxu0
      %v807 = vpop.f32.mrf.mxu0
      %808 = vdwg.mxu0
      %v809 = vadd.f32 %v736, %v804
      %v810 = vld [vmem:[%s7] sm:$0x1]
      %v812 = vlaneseq
      %v813 = vshrl.u32 %v812, 7
      %v814 = vsub.s32 0, %v813
      %v815 = vrot.slane %v810, %v814
      %v817 = vadd.f32 %v809, %v815
      %v818 = vmax.f32 %v817, 0.0
      %v819 = vpack.c.bf16 %v818, %v818
      %v820 = vld [vmem:[%s8] sm:$0xf]
      %v821 = vld [vmem:[%s8 + $0x4] sm:$0xf]
      %v822 = vld [vmem:[%s8 + $0x8] sm:$0xf]
      %v823 = vld [vmem:[%s8 + $0xc] sm:$0xf]
      %v824 = vld [vmem:[%s8 + $0x10] sm:$0xf]
      %v825 = vld [vmem:[%s8 + $0x14] sm:$0xf]
      %v826 = vld [vmem:[%s8 + $0x18] sm:$0xf]
      %v827 = vld [vmem:[%s8 + $0x1c] sm:$0xf]
      %v828 = vld [vmem:[%s8 + $0x20] sm:$0xf]
      %v829 = vld [vmem:[%s8 + $0x24] sm:$0xf]
      %v830 = vld [vmem:[%s8 + $0x28] sm:$0xf]
      %v831 = vld [vmem:[%s8 + $0x2c] sm:$0xf]
      %v832 = vld [vmem:[%s8 + $0x30] sm:$0xf]
      %v833 = vld [vmem:[%s8 + $0x34] sm:$0xf]
      %v834 = vld [vmem:[%s8 + $0x38] sm:$0xf]
      %v835 = vld [vmem:[%s8 + $0x3c] sm:$0xf]
      %v836 = vld [vmem:[%s9] sm:$0x1]
      %v838 = vlaneseq
      %v839 = vshrl.u32 %v838, 7
      %v840 = vsub.s32 0, %v839
      %v841 = vrot.slane %v836, %v840
      %v859 = vunpack.c.l.b16 %v820
      %v860 = vunpack.c.l.b16 %v821
      %v861 = vunpack.c.l.b16 %v822
      %v862 = vunpack.c.l.b16 %v823
      %v863 = vunpack.c.l.b16 %v824
      %v864 = vunpack.c.l.b16 %v825
      %v865 = vunpack.c.l.b16 %v826
      %v866 = vunpack.c.l.b16 %v827
      %v867 = vunpack.c.l.b16 %v828
      %v868 = vunpack.c.l.b16 %v829
      %v869 = vunpack.c.l.b16 %v830
      %v870 = vunpack.c.l.b16 %v831
      %v871 = vunpack.c.l.b16 %v832
      %v872 = vunpack.c.l.b16 %v833
      %v873 = vunpack.c.l.b16 %v834
      %v874 = vunpack.c.l.b16 %v835
      %v875 = vpack.c.b16 %v860, %v859
      %v876 = vpack.c.b16 %v862, %v861
      %v877 = vpack.c.b16 %v864, %v863
      %v878 = vpack.c.b16 %v866, %v865
      %v879 = vpack.c.b16 %v868, %v867
      %v880 = vpack.c.b16 %v870, %v869
      %v881 = vpack.c.b16 %v872, %v871
      %v882 = vpack.c.b16 %v874, %v873
      %891 = vmatprep.subr.bf16.mxu0 0
      %892 = vmatpush1.bf16.msra.mxu0 %v882
      %893 = vmatprep.subr.bf16.mxu0 0
      %894 = vmatpush1.bf16.msra.mxu0 %v881
      %895 = vmatprep.subr.bf16.mxu0 0
      %896 = vmatpush1.bf16.msra.mxu0 %v880
      %897 = vmatprep.subr.bf16.mxu0 0
      %898 = vmatpush1.bf16.msra.mxu0 %v879
      %899 = vmatprep.subr.bf16.mxu0 0
      %900 = vmatpush1.bf16.msra.mxu0 %v878
      %901 = vmatprep.subr.bf16.mxu0 0
      %902 = vmatpush1.bf16.msra.mxu0 %v877
      %903 = vmatprep.subr.bf16.mxu0 0
      %904 = vmatpush1.bf16.msra.mxu0 %v876
      %905 = vmatprep.subr.bf16.mxu0 0
      %906 = vmatpush1.bf16.msra.mxu0 %v875
      %907 = vmatprep.subr.bf16.mxu0 0
      %908 = vmatpush2.bf16.msra.mxu0 0
      %909 = vmatprep.subr.bf16.mxu0 0
      %910 = vmatpush2.bf16.msra.mxu0 0
      %911 = vmatprep.subr.bf16.mxu0 0
      %912 = vmatpush2.bf16.msra.mxu0 0
      %913 = vmatprep.subr.bf16.mxu0 0
      %914 = vmatpush2.bf16.msra.mxu0 0
      %915 = vmatprep.subr.bf16.mxu0 0
      %916 = vmatpush2.bf16.msra.mxu0 0
      %917 = vmatprep.subr.bf16.mxu0 0
      %918 = vmatpush2.bf16.msra.mxu0 0
      %919 = vmatprep.subr.bf16.mxu0 0
      %920 = vmatpush2.bf16.msra.mxu0 0
      %921 = vmatprep.subr.bf16.mxu0 0
      %922 = vmatpush2.bf16.msra.mxu0 0
      %923 = vmatprep.mubr.bf16.mxu0 0
      %924 = vmatmul.mubr.bf16.gmra.mxu0 %v819
      %v925 = vpop.f32.mrf.mxu0
      %v926 = vadd.f32 %v841, %v925
      %v927 = vpop.f32.mrf.mxu0
      %v928 = vpop.f32.mrf.mxu0
      %v929 = vpop.f32.mrf.mxu0
      %930 = vdwg.mxu0
      %931 = vst [vmem:[#allocation4] sm:$0x3] %v926
    $region49: #{mobilenet_gnn_forward.1} parent=1 // pred_fallthru
      _
    // Predicated region
    $region50: #{mobilenet_gnn_forward.1} parent=1 // pred_check
      _
    $region51: #{mobilenet_gnn_forward.1} parent=1 // pred_check_branch
      %933 = sbr.rel (0) target = $region53
    $region52: #{mobilenet_gnn_forward.1} parent=1 // pred_region
      %s935 = ssub.s32 32, 32
      %936 = vsyncadd [#allocation5], %s935
      %s938 = sshll.u32 [#allocation4], 4
      %s939 = int_to_ptr.vmem [resolvable:$true] %s938
      %941 = dma.vmem_to_hbm [thread:$0]  %s939, 32, %s10, [#allocation5]
    $region53: #{mobilenet_gnn_forward.1} parent=1 // pred_fallthru
      _
    // Predicated region
    $region54: #{mobilenet_gnn_forward.1} parent=1 // pred_check
      _
    $region55: #{mobilenet_gnn_forward.1} parent=1 // pred_check_branch
      %943 = sbr.rel (0) target = $region57
    $region56: #{mobilenet_gnn_forward.1} parent=1 // pred_region
      %944 = dma.done [#allocation5], 32
    $region57: #{mobilenet_gnn_forward.1} parent=1 // pred_fallthru
      _
    %945 = vsyncpa [#allocation5], 1

</llo_original>
